<compile_context>
chip_gen: v6e
topology: v6e:2x2x1
jax: 0.10.0
libtpu: 0.0.40
codegen_flags: <defaults>
</compile_context>

<pallas_src>
import math

import numpy as np
import jax
import jax.numpy as jnp
from jax.experimental import pallas as pl
from jax.experimental.pallas import tpu as pltpu


_BLOCK_BYTE_BUDGET = 12 * 1024 * 1024   # per output block (Pallas double-buffers it)
_VMEM_LIMIT_BYTES = 40 * 1024 * 1024    # explicit scoped-VMEM cap, safe on v5e..v7x
_MIN_SPLIT_ROWS = 16                    # split into >=2 blocks from here on (v7x: 2 TCs)
_MAX_WIDTH = 6144                       # cap on the exact ragged lane width
_MIN_WIDTH = 1024                       # below this, masked partial stores dominate


def _lcm(a, b):
    return a * b // math.gcd(a, b)


def _void_fill_kernel(bg_ref, o_ref):
    # bg_ref: (1, W) lane-dense background pattern (bg repeated W//C times).
    # o_ref : (tm, W) output tile -> sublane-broadcast the pattern over rows.
    o_ref[...] = jnp.broadcast_to(bg_ref[...], o_ref.shape)


def make_void_nerf_model(background, channel_scale=255.0):
    """Mirrors VoidNeRFModel.__init__: background / channel_scale as float32."""
    return jnp.asarray(np.array(background), dtype=jnp.float32) / jnp.float32(channel_scale)


def _choose_row_block(rows, width):
    """Row tile sizing: as large as the byte budget allows; split only when VMEM
    forces it; keep an even, >=2 step count so v7x's two TensorCores share the
    'parallel' axis.  Returns the row-block size (multiple of 8, or full extent)."""
    row_bytes = pl.cdiv(width, 128) * 128 * 4          # padded lane width in VMEM
    tm_budget = max(8, (_BLOCK_BYTE_BUDGET // row_bytes) // 8 * 8)
    if rows < _MIN_SPLIT_ROWS:
        return rows                                    # single full-extent block
    if rows <= tm_budget:
        grid = 2                                       # one block per v7x TensorCore
    else:
        grid = pl.cdiv(rows, tm_budget)
        if grid % 2:
            grid += 1                                  # balanced 2-core sharding
    tm = ((pl.cdiv(rows, grid) + 7) // 8) * 8
    return min(tm, rows)


def _fill_slab(rows, width, bg_row):
    """pallas_call emitting a (rows, width) slab filled with the bg pattern."""
    tm = _choose_row_block(rows, width)
    grid = pl.cdiv(rows, tm)
    return pl.pallas_call(
        _void_fill_kernel,
        out_shape=jax.ShapeDtypeStruct((rows, width), jnp.float32),
        grid_spec=pltpu.PrefetchScalarGridSpec(
            num_scalar_prefetch=0,
            grid=(grid,),
            # Constant index_map -> the (1, W) background block is DMA'd once.
            in_specs=[pl.BlockSpec((1, width), lambda i: (0, 0))],
            out_specs=pl.BlockSpec((tm, width), lambda i: (i, 0)),
        ),
        compiler_params=pltpu.CompilerParams(
            dimension_semantics=("parallel",),
            vmem_limit_bytes=_VMEM_LIMIT_BYTES,
        ),
        cost_estimate=pl.CostEstimate(
            flops=0, transcendentals=0, bytes_accessed=(rows * width + width) * 4
        ),
    )(bg_row)


def _pick_exact_width(M, C):
    """Find W = d*C with d | M so the flat output factors exactly as (M//d, W)
    and the final reshape is a free bitcast.  Prefer a large-ish W for lane-dense
    stores; tiny problems just use one short row.  Returns None if impossible."""
    d_hi = min(M, _MAX_WIDTH // C)
    d_lo = max(1, -(-_MIN_WIDTH // C))                 # ceil(_MIN_WIDTH / C)
    for d in range(d_hi, d_lo - 1, -1):
        if M % d == 0:
            return d * C
    if M * C <= _MAX_WIDTH:
        return M * C                                   # single short row, negligible size
    return None


def void_nerf_forward(position, background):
    """Pallas implementation of VoidNeRFModel.forward."""
    shape = tuple(position.shape[:-1])                 # coords (last dim) are unused
    C = int(background.shape[-1])
    M = int(np.prod(shape)) if len(shape) > 0 else 1
    total = M * C
    out_shape = shape + (C,)
    if total == 0:
        return jnp.zeros(out_shape, dtype=jnp.float32)

    bg = background.astype(jnp.float32).reshape(1, C)

    W0 = _lcm(C, 128)                                  # fully lane-dense width (384 for C=3)
    if total % W0 == 0:
        W = W0                                         # aligned: zero-copy reshape
    else:
        W = _pick_exact_width(M, C)                    # exact ragged factorization

    if W is not None:
        rows = total // W
        bg_row = jnp.tile(bg, (1, W // C))
        slab = _fill_slab(rows, W, bg_row)
        return slab.reshape(out_shape)                 # free (layout-preserving) reshape

    # Rare fallback: M has no usable divisor (e.g. large prime M).
    # TODO(synk): this path pays one extra HBM pass via the XLA slice copy.
    rows = pl.cdiv(total, W0)
    bg_row = jnp.tile(bg, (1, W0 // C))
    slab = _fill_slab(rows, W0, bg_row)
    return slab.reshape(-1)[:total].reshape(out_shape)


if __name__ == "__main__":
    key = jax.random.PRNGKey(0)

    bg3 = make_void_nerf_model([255.0, 128.0, 64.0], 255.0)          # C = 3
    bg4 = make_void_nerf_model([10.0, 20.0, 30.0, 40.0], 255.0)      # C = 4

    checks = [
        ((2, 128, 3), bg3),    # aligned: M % 128 == 0 -> W = 384, zero-copy reshape
        ((2, 17, 3), bg3),     # ragged, tiny -> exact (1, 102) slab, no slice copy
        ((4, 4096, 3), bg3),   # aligned, rows = 128 -> 2-block 'parallel' grid
        ((10, 100, 3), bg3),   # ragged -> exact divisor width (W = 3000)
        ((2051, 3), bg3),      # ragged, prime M -> fallback padded-slab path
        ((2, 50, 3), bg4),     # different channel count (C = 4)
    ]
    for pos_shape, bg in checks:
        C = int(bg.shape[-1])
        position = jax.random.normal(key, pos_shape, dtype=jnp.float32)
        out = jax.block_until_ready(void_nerf_forward(position, bg))

        lead = pos_shape[:-1]
        ref = jnp.broadcast_to(bg.reshape((1,) * (len(lead) - 1) + (C,)), lead + (C,))
        assert out.shape == lead + (C,), out.shape
        assert out.dtype == jnp.float32
        np.testing.assert_allclose(np.asarray(out), np.asarray(ref), rtol=0, atol=0)

    print("KERNEL_OK")
</pallas_src>

<mosaic_0001>
module attributes {stable_mosaic.version = 11 : i64} {
  func.func @_void_fill_kernel(%arg0: i32, %arg1: memref<1x384xf32, #tpu.memory_space<vmem>>, %arg2: memref<2x384xf32, #tpu.memory_space<vmem>>) attributes {dimension_semantics = [#tpu.dimension_semantics<parallel>], iteration_bounds = array<i64: 1>, scalar_prefetch = 0 : i64, scratch_operands = 0 : i64, tpu.core_type = #tpu.core_type<tc>, window_params = [{pipeline_mode = #tpu.pipeline_mode<synchronous>, transform_indices = @transform_0, window_bounds = array<i64: 1, 384>}, {transform_indices = @transform_1, window_bounds = array<i64: 2, 384>}]} {
    %c0 = arith.constant 0 : index
    %c0_0 = arith.constant 0 : index
    %0 = vector.load %arg1[%c0, %c0_0] : memref<1x384xf32, #tpu.memory_space<vmem>>, vector<1x384xf32>
    %1 = vector.shape_cast %0 : vector<1x384xf32> to vector<1x384xf32>
    %2 = vector.broadcast %1 : vector<1x384xf32> to vector<2x384xf32>
    %c0_1 = arith.constant 0 : index
    %c0_2 = arith.constant 0 : index
    %3 = vector.load %arg2[%c0_1, %c0_2] : memref<2x384xf32, #tpu.memory_space<vmem>>, vector<2x384xf32>
    tpu.vector_store %arg2[%c0_1, %c0_2], %2 {strides = array<i32>} : memref<2x384xf32, #tpu.memory_space<vmem>>, vector<2x384xf32>,
    return
  }
  func.func @transform_0(%arg0: i32) -> (i32, i32) {
    %c0_i32 = arith.constant 0 : i32
    %c0_i32_0 = arith.constant 0 : i32
    %c0_i32_1 = arith.constant 0 : i32
    return %c0_i32, %c0_i32_0 : i32, i32
  }
  func.func @transform_1(%arg0: i32) -> (i32, i32) {
    %c0_i32 = arith.constant 0 : i32
    %c0_i32_0 = arith.constant 0 : i32
    return %arg0, %c0_i32 : i32, i32
  }
}

</mosaic_0001>

<llo_original>
// kernel: tpu_custom_call.1
$region0: #{tpu_custom_call.1}
  #allocation0 [shape = 'u32[]', space=smem, size = 0x4, offset = 0x4, fixed_abs, tag = 'smem constant byte address 0x4 - core index']
  #allocation1 [shape = 'u32[144,128]{1,0:T(1,128)}', space=vmem, size = 0x12000, scoped, tag = 'internal scratch']
  %s0 = inlined_call_operand.hbm [shape: f32[1,384], index: 0, kind: input, shape index: {}]
  %s1 = inlined_call_operand.hbm [shape: f32[2,384], index: 1, kind: output, shape index: {}]
  %s2 = sld [smem:[#allocation0]]
  $region18: #{tpu_custom_call.1} parent=0
    _
  %s4 = ssub.s32 1, %s2
  %s5 = scalar_select 0, %s4, %s2
  $region1: #{tpu_custom_call.1} parent=0
    #allocation2 [shape = 'u8[1536]{0}', space=vmem, size = 0x800, scoped, tag = 'input window, operand 0, single buffered']
    #allocation3 [shape = 's32[1]{0}', space=sflag, size = 0x4, scoped, tag = 'scoped memory for tpu_custom_call.1']
    #allocation4 [shape = 's32[1]{0}', space=sflag, size = 0x4, scoped, tag = 'scoped memory for tpu_custom_call.1']
    #allocation5 [shape = 'u8[3072]{0}', space=vmem, size = 0xc00, scoped, tag = 'output window, operand 0, single buffered']
    %6 = vsyncpa [#allocation3], 0
    %7 = vsyncpa [#allocation4], 0
    // Predicated region
    $region2: #{tpu_custom_call.1} parent=1 // pred_check
      _
    $region3: #{tpu_custom_call.1} parent=1 // pred_check_branch
      %9 = sbr.rel (0) target = $region5
    $region4: #{tpu_custom_call.1} parent=1 // pred_region
      %s11 = ssub.s32 48, 48
      %12 = vsyncadd [#allocation3], %s11
      %s14 = sshll.u32 [#allocation2], 4
      %s15 = int_to_ptr.vmem [resolvable:$true] %s14
      %17 = dma.hbm_to_vmem [thread:$0]  %s0, 48, %s15, [#allocation3]
    $region5: #{tpu_custom_call.1} parent=1 // pred_fallthru
      _
    // Predicated region
    $region6: #{tpu_custom_call.1} parent=1 // pred_check
      _
    $region7: #{tpu_custom_call.1} parent=1 // pred_check_branch
      %19 = sbr.rel (0) target = $region9
    $region8: #{tpu_custom_call.1} parent=1 // pred_region
      %20 = dma.done [#allocation3], 48
    $region9: #{tpu_custom_call.1} parent=1 // pred_fallthru
      _
    %v21 = vld [vmem:[#allocation2] sm:$0x7]
    %v23 = vlaneseq
    %v24 = vshrl.u32 %v23, 7
    %v25 = vsub.s32 0, %v24
    %v26 = vrot.slane %v21, %v25
    %v27 = vlaneseq
    %v28 = vshrl.u32 %v27, 7
    %v29 = vsub.s32 1, %v28
    %v30 = vrot.slane %v21, %v29
    %v31 = vlaneseq
    %v32 = vshrl.u32 %v31, 7
    %v33 = vsub.s32 2, %v32
    %v34 = vrot.slane %v21, %v33
    %v35 = vcombine.low %v26, %v30
    %v37 = vunpack.c.l.s4 1983009808
    %v38 = vunpack.c.0.s8 %v37
    %v39 = vlaneseq
    %v40 = vshrl.u32 %v39, 7
    %v41 = vsub.s32 %v38, %v40
    %v42 = vrot.slane %v35, %v41
    %v44 = vunpack.c.l.s4 1983009808
    %v45 = vunpack.c.0.s8 %v44
    %v46 = vlaneseq
    %v47 = vshrl.u32 %v46, 7
    %v48 = vsub.s32 %v45, %v47
    %v49 = vrot.slane %v34, %v48
    %v50 = vcombine.low %v42, %v49
    %52 = vst [vmem:[#allocation5] sm:$0x3f] %v50
    // Predicated region
    $region10: #{tpu_custom_call.1} parent=1 // pred_check
      _
    $region11: #{tpu_custom_call.1} parent=1 // pred_check_branch
      %54 = sbr.rel (0) target = $region13
    $region12: #{tpu_custom_call.1} parent=1 // pred_region
      %s56 = ssub.s32 96, 96
      %57 = vsyncadd [#allocation4], %s56
      %s59 = sshll.u32 [#allocation5], 4
      %s60 = int_to_ptr.vmem [resolvable:$true] %s59
      %62 = dma.vmem_to_hbm [thread:$0]  %s60, 96, %s1, [#allocation4]
    $region13: #{tpu_custom_call.1} parent=1 // pred_fallthru
      _
    // Predicated region
    $region14: #{tpu_custom_call.1} parent=1 // pred_check
      _
    $region15: #{tpu_custom_call.1} parent=1 // pred_check_branch
      %64 = sbr.rel (0) target = $region17
    $region16: #{tpu_custom_call.1} parent=1 // pred_region
      %65 = dma.done [#allocation4], 96
    $region17: #{tpu_custom_call.1} parent=1 // pred_fallthru
      _
    %66 = vsyncpa [#allocation3], 1
    %67 = vsyncpa [#allocation4], 1

</llo_original>
